<compile_context>
chip_gen: v7x
topology: tpu7x:2x2x1
jax: 0.10.0
libtpu: 0.0.40
codegen_flags: <defaults>
</compile_context>

<pallas_src>
import functools

import jax
import jax.numpy as jnp
from jax import lax
from jax.experimental import pallas as pl
from jax.experimental.pallas import tpu as pltpu


def _round_up(x, m):
    return ((x + m - 1) // m) * m


def mlp_kernel(x_ref, w1_ref, b1_ref, w2_ref, b2_ref, w3_ref, b3_ref, o_ref,
               *, chunk, n_chunks):
    """fc1+ReLU -> fc2+ReLU -> fc3, processed in `chunk`-row slices of the batch tile.

    Matmul operand dtype follows the weight dtype (f32 or bf16); accumulation is
    always f32 (preferred_element_type) and bias-add / ReLU stay f32 on the VPU.
    """
    wdt = w1_ref.dtype
    w1 = w1_ref[...]
    b1 = b1_ref[...]
    w2 = w2_ref[...]
    b2 = b2_ref[...]
    w3 = w3_ref[...]
    b3 = b3_ref[...]

    def one_chunk(xc):
        h1 = jnp.dot(xc.astype(wdt), w1, preferred_element_type=jnp.float32)
        h1 = jnp.maximum(h1 + b1, 0.0)
        h2 = jnp.dot(h1.astype(wdt), w2, preferred_element_type=jnp.float32)
        h2 = jnp.maximum(h2 + b2, 0.0)
        out = jnp.dot(h2.astype(wdt), w3, preferred_element_type=jnp.float32)
        return (out + b3).astype(o_ref.dtype)

    if n_chunks == 1:
        o_ref[...] = one_chunk(x_ref[...])
    else:
        def body(c, carry):
            r0 = pl.multiple_of(c * chunk, chunk)
            o_ref[pl.ds(r0, chunk), :] = one_chunk(x_ref[pl.ds(r0, chunk), :])
            return carry

        # Modest unroll: enough for MXU overlap across chunks without vreg blowup.
        lax.fori_loop(0, n_chunks, body, 0, unroll=2)


def neural_net_forward(x, params, *, use_bf16_matmul=False,
                       batch_tile=2048, chunk_rows=256):
    """x: (batch, input_size) float32.  params: dict of (in,out) weights + (1,out) biases."""
    w1, b1 = params["w1"], params["b1"]
    w2, b2 = params["w2"], params["b2"]
    w3, b3 = params["w3"], params["b3"]

    batch, in_size = x.shape
    h1_size = w1.shape[1]
    h2_size = w2.shape[1]
    out_size = w3.shape[1]

    # --- Pad hidden2 to a full 128-lane width (internal only; output unchanged). ---
    h2_pad = _round_up(h2_size, 128)
    if h2_pad != h2_size:
        p = h2_pad - h2_size
        w2 = jnp.pad(w2, ((0, 0), (0, p)))
        b2 = jnp.pad(b2, ((0, 0), (0, p)))
        w3 = jnp.pad(w3, ((0, p), (0, 0)))

    if use_bf16_matmul:
        # bf16 matmul operands: weights AND the streamed input x (halves its DMA).
        # Biases and accumulation stay f32.  NOTE: h1/h2 are also bf16 on this path.
        x = x.astype(jnp.bfloat16)
        w1, w2, w3 = (w.astype(jnp.bfloat16) for w in (w1, w2, w3))

    align = 16 if use_bf16_matmul else 8
    assert batch_tile % chunk_rows == 0 and chunk_rows % align == 0

    # Batch tile: big enough to amortize the ~0.35 us/step grid overhead, but capped
    # at ~batch/2 so there are >= 2 grid steps for v7x's two TensorCores.
    tb = min(batch_tile, max(align, _round_up(pl.cdiv(batch, 2), align)))
    if tb >= batch:
        tb = batch                       # tiny batch: one step covers everything
    elif tb > chunk_rows:
        tb = min(batch_tile, _round_up(tb, chunk_rows))

    chunk = tb if tb <= chunk_rows else chunk_rows
    n_chunks = max(1, tb // chunk)
    grid = (pl.cdiv(batch, tb),)

    # x / o stream per grid step; weights & biases are resident (same block every
    # step -> fetched once, not re-DMA'd per batch tile).
    x_spec = pl.BlockSpec((tb, in_size), lambda i: (i, 0))
    o_spec = pl.BlockSpec((tb, out_size), lambda i: (i, 0))
    resident = lambda shape: pl.BlockSpec(shape, lambda i: (0, 0))

    # VMEM budget: resident weights/biases + double-buffered x/out tiles + a
    # conservative full-tile h1/h2 allowance (chunking keeps the real footprint lower).
    elt = 2 if use_bf16_matmul else 4
    vmem_bytes = (
        (int(w1.size) + int(w2.size) + int(w3.size)) * elt
        + (int(b1.size) + int(b2.size) + int(b3.size)) * 4
        + 2 * tb * in_size * elt
        + 2 * tb * out_size * 4
        + tb * (h1_size + h2_pad) * 4
    )
    vmem_limit = min(64 << 20, max(32 << 20, 2 * vmem_bytes))

    flops = 2 * batch * (in_size * h1_size + h1_size * h2_pad + h2_pad * out_size)
    bytes_accessed = sum(int(a.size) * a.dtype.itemsize
                         for a in (x, w1, b1, w2, b2, w3, b3)) \
        + batch * out_size * 4

    kernel = functools.partial(mlp_kernel, chunk=chunk, n_chunks=n_chunks)

    return pl.pallas_call(
        kernel,
        out_shape=jax.ShapeDtypeStruct((batch, out_size), jnp.float32),
        grid=grid,
        in_specs=[
            x_spec,
            resident(w1.shape), resident(b1.shape),
            resident(w2.shape), resident(b2.shape),
            resident(w3.shape), resident(b3.shape),
        ],
        out_specs=o_spec,
        compiler_params=pltpu.CompilerParams(
            # Batch tiles are independent -> shard across v7x's 2 TensorCores.
            dimension_semantics=("parallel",),
            vmem_limit_bytes=int(vmem_limit),
        ),
        cost_estimate=pl.CostEstimate(
            flops=flops, transcendentals=0, bytes_accessed=bytes_accessed),
    )(x, w1, b1, w2, b2, w3, b3)


def init_params(key, input_size, output_size, hidden_size1=256, hidden_size2=64):
    ks = jax.random.split(key, 6)

    def lin(kw, kb, fan_in, fan_out):
        # uniform init mimicking nn.Linear's default bound 1/sqrt(fan_in)
        bound = 1.0 / jnp.sqrt(fan_in)
        w = jax.random.uniform(kw, (fan_in, fan_out), jnp.float32, -bound, bound)
        b = jax.random.uniform(kb, (1, fan_out), jnp.float32, -bound, bound)
        return w, b

    w1, b1 = lin(ks[0], ks[1], input_size, hidden_size1)
    w2, b2 = lin(ks[2], ks[3], hidden_size1, hidden_size2)
    w3, b3 = lin(ks[4], ks[5], hidden_size2, output_size)
    return {"w1": w1, "b1": b1, "w2": w2, "b2": b2, "w3": w3, "b3": b3}


def reference_forward(x, p):
    h1 = jnp.maximum(x @ p["w1"] + p["b1"], 0.0)
    h2 = jnp.maximum(h1 @ p["w2"] + p["b2"], 0.0)
    return h2 @ p["w3"] + p["b3"]


if __name__ == "__main__":
    key = jax.random.PRNGKey(0)
    k_param, k_x1, k_x2 = jax.random.split(key, 3)

    input_size, output_size = 16, 8
    params = init_params(k_param, input_size, output_size,
                         hidden_size1=256, hidden_size2=64)

    # Small batch: single grid step, single in-kernel chunk.
    x_small = jax.random.normal(k_x1, (8, input_size), jnp.float32)
    ref_small = reference_forward(x_small, params)
    out_small = jax.block_until_ready(neural_net_forward(x_small, params))
    assert out_small.shape == (8, output_size)
    assert jnp.allclose(out_small, ref_small, atol=1e-4, rtol=1e-4)

    # Larger batch: 2 grid steps (megacore path), in-kernel chunking, partial last tile.
    x_big = jax.random.normal(k_x2, (600, input_size), jnp.float32)
    ref_big = reference_forward(x_big, params)
    out_big = jax.block_until_ready(neural_net_forward(x_big, params))
    assert out_big.shape == (600, output_size)
    assert jnp.allclose(out_big, ref_big, atol=1e-4, rtol=1e-4)

    # bf16-matmul path (weights + activations bf16, f32 accumulation); looser tolerance.
    out_bf16 = jax.block_until_ready(
        neural_net_forward(x_big, params, use_bf16_matmul=True))
    assert jnp.allclose(out_bf16, ref_big, atol=5e-2, rtol=5e-2)

    print("KERNEL_OK")
</pallas_src>

<mosaic_0001>
module attributes {stable_mosaic.version = 11 : i64} {
  func.func @mlp_kernel(%arg0: i32, %arg1: memref<8x16xf32, #tpu.memory_space<vmem>>, %arg2: memref<16x256xf32, #tpu.memory_space<vmem>>, %arg3: memref<1x256xf32, #tpu.memory_space<vmem>>, %arg4: memref<256x128xf32, #tpu.memory_space<vmem>>, %arg5: memref<1x128xf32, #tpu.memory_space<vmem>>, %arg6: memref<128x8xf32, #tpu.memory_space<vmem>>, %arg7: memref<1x8xf32, #tpu.memory_space<vmem>>, %arg8: memref<8x8xf32, #tpu.memory_space<vmem>>) attributes {dimension_semantics = [#tpu.dimension_semantics<parallel>], iteration_bounds = array<i64: 1>, scalar_prefetch = 0 : i64, scratch_operands = 0 : i64, tpu.core_type = #tpu.core_type<tc>, window_params = [{transform_indices = @transform_0, window_bounds = array<i64: 8, 16>}, {pipeline_mode = #tpu.pipeline_mode<synchronous>, transform_indices = @transform_1, window_bounds = array<i64: 16, 256>}, {pipeline_mode = #tpu.pipeline_mode<synchronous>, transform_indices = @transform_2, window_bounds = array<i64: 1, 256>}, {pipeline_mode = #tpu.pipeline_mode<synchronous>, transform_indices = @transform_3, window_bounds = array<i64: 256, 128>}, {pipeline_mode = #tpu.pipeline_mode<synchronous>, transform_indices = @transform_4, window_bounds = array<i64: 1, 128>}, {pipeline_mode = #tpu.pipeline_mode<synchronous>, transform_indices = @transform_5, window_bounds = array<i64: 128, 8>}, {pipeline_mode = #tpu.pipeline_mode<synchronous>, transform_indices = @transform_6, window_bounds = array<i64: 1, 8>}, {transform_indices = @transform_7, window_bounds = array<i64: 8, 8>}]} {
    %c0 = arith.constant 0 : index
    %c0_0 = arith.constant 0 : index
    %0 = vector.load %arg2[%c0, %c0_0] : memref<16x256xf32, #tpu.memory_space<vmem>>, vector<16x256xf32>
    %c0_1 = arith.constant 0 : index
    %c0_2 = arith.constant 0 : index
    %1 = vector.load %arg3[%c0_1, %c0_2] : memref<1x256xf32, #tpu.memory_space<vmem>>, vector<1x256xf32>
    %c0_3 = arith.constant 0 : index
    %c0_4 = arith.constant 0 : index
    %2 = vector.load %arg4[%c0_3, %c0_4] : memref<256x128xf32, #tpu.memory_space<vmem>>, vector<256x128xf32>
    %c0_5 = arith.constant 0 : index
    %c0_6 = arith.constant 0 : index
    %3 = vector.load %arg5[%c0_5, %c0_6] : memref<1x128xf32, #tpu.memory_space<vmem>>, vector<1x128xf32>
    %c0_7 = arith.constant 0 : index
    %c0_8 = arith.constant 0 : index
    %4 = vector.load %arg6[%c0_7, %c0_8] : memref<128x8xf32, #tpu.memory_space<vmem>>, vector<128x8xf32>
    %c0_9 = arith.constant 0 : index
    %c0_10 = arith.constant 0 : index
    %5 = vector.load %arg7[%c0_9, %c0_10] : memref<1x8xf32, #tpu.memory_space<vmem>>, vector<1x8xf32>
    %c0_11 = arith.constant 0 : index
    %c0_12 = arith.constant 0 : index
    %6 = vector.load %arg1[%c0_11, %c0_12] : memref<8x16xf32, #tpu.memory_space<vmem>>, vector<8x16xf32>
    %cst = arith.constant dense<0.000000e+00> : vector<8x256xf32>
    %7 = tpu.matmul %6, %0, %cst {dimension_numbers = #tpu.dot_dimension_numbers<[1], [0], [0], [1], [0, 0, 1, 1], [], []>} : vector<8x16xf32>, vector<16x256xf32>, vector<8x256xf32> -> vector<8x256xf32>
    %8 = vector.broadcast %1 : vector<1x256xf32> to vector<8x256xf32>
    %9 = arith.addf %7, %8 : vector<8x256xf32>
    %cst_13 = arith.constant 0.000000e+00 : f32
    %10 = vector.broadcast %cst_13 : f32 to vector<8x256xf32>
    %11 = arith.maximumf %9, %10 : vector<8x256xf32>
    %cst_14 = arith.constant dense<0.000000e+00> : vector<8x128xf32>
    %12 = tpu.matmul %11, %2, %cst_14 {dimension_numbers = #tpu.dot_dimension_numbers<[1], [0], [0], [1], [0, 0, 1, 1], [], []>} : vector<8x256xf32>, vector<256x128xf32>, vector<8x128xf32> -> vector<8x128xf32>
    %13 = vector.broadcast %3 : vector<1x128xf32> to vector<8x128xf32>
    %14 = arith.addf %12, %13 : vector<8x128xf32>
    %cst_15 = arith.constant 0.000000e+00 : f32
    %15 = vector.broadcast %cst_15 : f32 to vector<8x128xf32>
    %16 = arith.maximumf %14, %15 : vector<8x128xf32>
    %cst_16 = arith.constant dense<0.000000e+00> : vector<8x8xf32>
    %17 = tpu.matmul %16, %4, %cst_16 {dimension_numbers = #tpu.dot_dimension_numbers<[1], [0], [0], [1], [0, 0, 1, 1], [], []>} : vector<8x128xf32>, vector<128x8xf32>, vector<8x8xf32> -> vector<8x8xf32>
    %18 = vector.broadcast %5 : vector<1x8xf32> to vector<8x8xf32>
    %19 = arith.addf %17, %18 : vector<8x8xf32>
    %c0_17 = arith.constant 0 : index
    %c0_18 = arith.constant 0 : index
    %20 = vector.load %arg8[%c0_17, %c0_18] : memref<8x8xf32, #tpu.memory_space<vmem>>, vector<8x8xf32>
    tpu.vector_store %arg8[%c0_17, %c0_18], %19 {strides = array<i32>} : memref<8x8xf32, #tpu.memory_space<vmem>>, vector<8x8xf32>,
    return
  }
  func.func @transform_0(%arg0: i32) -> (i32, i32) {
    %c0_i32 = arith.constant 0 : i32
    %c0_i32_0 = arith.constant 0 : i32
    return %arg0, %c0_i32 : i32, i32
  }
  func.func @transform_1(%arg0: i32) -> (i32, i32) {
    %c0_i32 = arith.constant 0 : i32
    %c0_i32_0 = arith.constant 0 : i32
    %c0_i32_1 = arith.constant 0 : i32
    return %c0_i32, %c0_i32_0 : i32, i32
  }
  func.func @transform_2(%arg0: i32) -> (i32, i32) {
    %c0_i32 = arith.constant 0 : i32
    %c0_i32_0 = arith.constant 0 : i32
    %c0_i32_1 = arith.constant 0 : i32
    return %c0_i32, %c0_i32_0 : i32, i32
  }
  func.func @transform_3(%arg0: i32) -> (i32, i32) {
    %c0_i32 = arith.constant 0 : i32
    %c0_i32_0 = arith.constant 0 : i32
    %c0_i32_1 = arith.constant 0 : i32
    return %c0_i32, %c0_i32_0 : i32, i32
  }
  func.func @transform_4(%arg0: i32) -> (i32, i32) {
    %c0_i32 = arith.constant 0 : i32
    %c0_i32_0 = arith.constant 0 : i32
    %c0_i32_1 = arith.constant 0 : i32
    return %c0_i32, %c0_i32_0 : i32, i32
  }
  func.func @transform_5(%arg0: i32) -> (i32, i32) {
    %c0_i32 = arith.constant 0 : i32
    %c0_i32_0 = arith.constant 0 : i32
    %c0_i32_1 = arith.constant 0 : i32
    return %c0_i32, %c0_i32_0 : i32, i32
  }
  func.func @transform_6(%arg0: i32) -> (i32, i32) {
    %c0_i32 = arith.constant 0 : i32
    %c0_i32_0 = arith.constant 0 : i32
    %c0_i32_1 = arith.constant 0 : i32
    return %c0_i32, %c0_i32_0 : i32, i32
  }
  func.func @transform_7(%arg0: i32) -> (i32, i32) {
    %c0_i32 = arith.constant 0 : i32
    %c0_i32_0 = arith.constant 0 : i32
    return %arg0, %c0_i32 : i32, i32
  }
}

</mosaic_0001>

<llo_original>
// kernel: tpu_custom_call.1
$region0: #{tpu_custom_call.1}
  #allocation0 [shape = 'u32[]', space=smem, size = 0x4, offset = 0x4, fixed_abs, tag = 'smem constant byte address 0x4 - core index']
  #allocation1 [shape = 'u32[144,128]{1,0:T(1,128)}', space=vmem, size = 0x12000, scoped, tag = 'internal scratch']
  %s0 = inlined_call_operand.vmem [shape: f32[8,16], index: 0, kind: input, shape index: {}]
  %s1 = inlined_call_operand.vmem [shape: f32[16,256], index: 1, kind: input, shape index: {}]
  %s2 = inlined_call_operand.vmem [shape: f32[1,256], index: 2, kind: input, shape index: {}]
  %s3 = inlined_call_operand.hbm [shape: f32[256,128], index: 3, kind: input, shape index: {}]
  %s4 = inlined_call_operand.vmem [shape: f32[1,128], index: 4, kind: input, shape index: {}]
  %s5 = inlined_call_operand.vmem [shape: f32[128,8], index: 5, kind: input, shape index: {}]
  %s6 = inlined_call_operand.vmem [shape: f32[1,8], index: 6, kind: input, shape index: {}]
  %s7 = inlined_call_operand.hbm [shape: f32[8,8], index: 7, kind: output, shape index: {}]
  %s8 = sld [smem:[#allocation0]]
  $region42: #{tpu_custom_call.1} parent=0
    _
  %s10 = ssub.s32 1, %s8
  %s11 = scalar_select 0, %s10, %s8
  $region1: #{tpu_custom_call.1} parent=0
    #allocation2 [shape = 'u8[131072]{0}', space=vmem, size = 0x20000, scoped, tag = 'input window, operand 3, single buffered']
    #allocation3 [shape = 's32[1]{0}', space=sflag, size = 0x4, scoped, tag = 'scoped memory for tpu_custom_call.1']
    #allocation4 [shape = 's32[1]{0}', space=sflag, size = 0x4, scoped, tag = 'scoped memory for tpu_custom_call.1']
    #allocation5 [shape = 'u8[4096]{0}', space=vmem, size = 0x1000, scoped, tag = 'output window, operand 0, single buffered']
    %12 = vsyncpa [#allocation3], 0
    %13 = vsyncpa [#allocation4], 0
    // Predicated region
    $region2: #{tpu_custom_call.1} parent=1 // pred_check
      _
    $region3: #{tpu_custom_call.1} parent=1 // pred_check_branch
      %15 = sbr.rel (0) target = $region5
    $region4: #{tpu_custom_call.1} parent=1 // pred_region
      _
    $region5: #{tpu_custom_call.1} parent=1 // pred_fallthru
      _
    // Predicated region
    $region6: #{tpu_custom_call.1} parent=1 // pred_check
      _
    $region7: #{tpu_custom_call.1} parent=1 // pred_check_branch
      %17 = sbr.rel (0) target = $region9
    $region8: #{tpu_custom_call.1} parent=1 // pred_region
      _
    $region9: #{tpu_custom_call.1} parent=1 // pred_fallthru
      _
    // Predicated region
    $region10: #{tpu_custom_call.1} parent=1 // pred_check
      _
    $region11: #{tpu_custom_call.1} parent=1 // pred_check_branch
      %19 = sbr.rel (0) target = $region13
    $region12: #{tpu_custom_call.1} parent=1 // pred_region
      _
    $region13: #{tpu_custom_call.1} parent=1 // pred_fallthru
      _
    // Predicated region
    $region14: #{tpu_custom_call.1} parent=1 // pred_check
      _
    $region15: #{tpu_custom_call.1} parent=1 // pred_check_branch
      %21 = sbr.rel (0) target = $region17
    $region16: #{tpu_custom_call.1} parent=1 // pred_region
      %s23 = ssub.s32 4096, 4096
      %24 = vsyncadd [#allocation3], %s23
      %s25 = sshll.u32 [#allocation2], 4
      %s26 = int_to_ptr.vmem [resolvable:$true] %s25
      %31 = dma.hbm_to_vmem [thread:$0]  %s3, 4096, %s26, [#allocation3], 128, 128, 8
    $region17: #{tpu_custom_call.1} parent=1 // pred_fallthru
      _
    // Predicated region
    $region18: #{tpu_custom_call.1} parent=1 // pred_check
      _
    $region19: #{tpu_custom_call.1} parent=1 // pred_check_branch
      %33 = sbr.rel (0) target = $region21
    $region20: #{tpu_custom_call.1} parent=1 // pred_region
      _
    $region21: #{tpu_custom_call.1} parent=1 // pred_fallthru
      _
    // Predicated region
    $region22: #{tpu_custom_call.1} parent=1 // pred_check
      _
    $region23: #{tpu_custom_call.1} parent=1 // pred_check_branch
      %35 = sbr.rel (0) target = $region25
    $region24: #{tpu_custom_call.1} parent=1 // pred_region
      _
    $region25: #{tpu_custom_call.1} parent=1 // pred_fallthru
      _
    // Predicated region
    $region26: #{tpu_custom_call.1} parent=1 // pred_check
      _
    $region27: #{tpu_custom_call.1} parent=1 // pred_check_branch
      %37 = sbr.rel (0) target = $region29
    $region28: #{tpu_custom_call.1} parent=1 // pred_region
      _
    $region29: #{tpu_custom_call.1} parent=1 // pred_fallthru
      _
    // Predicated region
    $region30: #{tpu_custom_call.1} parent=1 // pred_check
      _
    $region31: #{tpu_custom_call.1} parent=1 // pred_check_branch
      %39 = sbr.rel (0) target = $region33
    $region32: #{tpu_custom_call.1} parent=1 // pred_region
      %40 = dma.done [#allocation3], 4096
    $region33: #{tpu_custom_call.1} parent=1 // pred_fallthru
      _
    %v41 = vld [vmem:[%s1] sm:$0xff]
    %v42 = vld [vmem:[%s1 + $0x8] sm:$0xff]
    %v43 = vld [vmem:[%s1 + $0x10] sm:$0xff]
    %v44 = vld [vmem:[%s1 + $0x18] sm:$0xff]
    %v45 = vld [vmem:[%s2] sm:$0x3]
    %v46 = vld [vmem:[#allocation2] sm:$0xff]
    %v47 = vld [vmem:[#allocation2 + $0x8] sm:$0xff]
    %v48 = vld [vmem:[#allocation2 + $0x10] sm:$0xff]
    %v49 = vld [vmem:[#allocation2 + $0x18] sm:$0xff]
    %v50 = vld [vmem:[#allocation2 + $0x20] sm:$0xff]
    %v51 = vld [vmem:[#allocation2 + $0x28] sm:$0xff]
    %v52 = vld [vmem:[#allocation2 + $0x30] sm:$0xff]
    %v53 = vld [vmem:[#allocation2 + $0x38] sm:$0xff]
    %v54 = vld [vmem:[#allocation2 + $0x40] sm:$0xff]
    %v55 = vld [vmem:[#allocation2 + $0x48] sm:$0xff]
    %v56 = vld [vmem:[#allocation2 + $0x50] sm:$0xff]
    %v57 = vld [vmem:[#allocation2 + $0x58] sm:$0xff]
    %v58 = vld [vmem:[#allocation2 + $0x60] sm:$0xff]
    %v59 = vld [vmem:[#allocation2 + $0x68] sm:$0xff]
    %v60 = vld [vmem:[#allocation2 + $0x70] sm:$0xff]
    %v61 = vld [vmem:[#allocation2 + $0x78] sm:$0xff]
    %v62 = vld [vmem:[#allocation2 + $0x80] sm:$0xff]
    %v63 = vld [vmem:[#allocation2 + $0x88] sm:$0xff]
    %v64 = vld [vmem:[#allocation2 + $0x90] sm:$0xff]
    %v65 = vld [vmem:[#allocation2 + $0x98] sm:$0xff]
    %v66 = vld [vmem:[#allocation2 + $0xa0] sm:$0xff]
    %v67 = vld [vmem:[#allocation2 + $0xa8] sm:$0xff]
    %v68 = vld [vmem:[#allocation2 + $0xb0] sm:$0xff]
    %v69 = vld [vmem:[#allocation2 + $0xb8] sm:$0xff]
    %v70 = vld [vmem:[#allocation2 + $0xc0] sm:$0xff]
    %v71 = vld [vmem:[#allocation2 + $0xc8] sm:$0xff]
    %v72 = vld [vmem:[#allocation2 + $0xd0] sm:$0xff]
    %v73 = vld [vmem:[#allocation2 + $0xd8] sm:$0xff]
    %v74 = vld [vmem:[#allocation2 + $0xe0] sm:$0xff]
    %v75 = vld [vmem:[#allocation2 + $0xe8] sm:$0xff]
    %v76 = vld [vmem:[#allocation2 + $0xf0] sm:$0xff]
    %v77 = vld [vmem:[#allocation2 + $0xf8] sm:$0xff]
    %v78 = vld [vmem:[%s4] sm:$0x1]
    %v79 = vld [vmem:[%s5] sm:$0xff]
    %v80 = vld [vmem:[%s5 + $0x8] sm:$0xff]
    %v81 = vld [vmem:[%s5 + $0x10] sm:$0xff]
    %v82 = vld [vmem:[%s5 + $0x18] sm:$0xff]
    %v83 = vld [vmem:[%s5 + $0x20] sm:$0xff]
    %v84 = vld [vmem:[%s5 + $0x28] sm:$0xff]
    %v85 = vld [vmem:[%s5 + $0x30] sm:$0xff]
    %v86 = vld [vmem:[%s5 + $0x38] sm:$0xff]
    %v87 = vld [vmem:[%s5 + $0x40] sm:$0xff]
    %v88 = vld [vmem:[%s5 + $0x48] sm:$0xff]
    %v89 = vld [vmem:[%s5 + $0x50] sm:$0xff]
    %v90 = vld [vmem:[%s5 + $0x58] sm:$0xff]
    %v91 = vld [vmem:[%s5 + $0x60] sm:$0xff]
    %v92 = vld [vmem:[%s5 + $0x68] sm:$0xff]
    %v93 = vld [vmem:[%s5 + $0x70] sm:$0xff]
    %v94 = vld [vmem:[%s5 + $0x78] sm:$0xff]
    %v95 = vld [vmem:[%s6] sm:$0x1]
    %v96 = vld [vmem:[%s0] sm:$0xff]
    %v98 = vlaneseq
    %v99 = vshrl.u32 %v98, 7
    %v100 = vsub.s32 0, %v99
    %v101 = vrot.slane %v45, %v100
    %v102 = vlaneseq
    %v103 = vshrl.u32 %v102, 7
    %v104 = vsub.s32 1, %v103
    %v105 = vrot.slane %v45, %v104
    %vm108 = vcmask 130048
    %v110 = vsel %vm108, %v96, 0
    %112 = vmatprep.subr.mxu0 %v42
    %113 = vmatpush1.msra.mxu0 %v41
    %114 = vmatprep.subr.mxu0 %v44
    %115 = vmatpush1.msra.mxu0 %v43
    %116 = vmatprep.subr.mxu0 0.0
    %117 = vmatpush1.msra.mxu0 0.0
    %118 = vmatprep.subr.mxu0 0.0
    %119 = vmatpush1.msra.mxu0 0.0
    %120 = vmatprep.subr.mxu0 0.0
    %121 = vmatpush1.msra.mxu0 0.0
    %122 = vmatprep.subr.mxu0 0.0
    %123 = vmatpush1.msra.mxu0 0.0
    %124 = vmatprep.subr.mxu0 0.0
    %125 = vmatpush1.msra.mxu0 0.0
    %126 = vmatprep.subr.mxu0 0.0
    %127 = vmatpush1.msra.mxu0 0.0
    %128 = vmatprep.subr.mxu0 0.0
    %129 = vmatpush1.msra.mxu0 0.0
    %130 = vmatprep.subr.mxu0 0.0
    %131 = vmatpush1.msra.mxu0 0.0
    %132 = vmatprep.subr.mxu0 0.0
    %133 = vmatpush1.msra.mxu0 0.0
    %134 = vmatprep.subr.mxu0 0.0
    %135 = vmatpush1.msra.mxu0 0.0
    %136 = vmatprep.subr.mxu0 0.0
    %137 = vmatpush1.msra.mxu0 0.0
    %138 = vmatprep.subr.mxu0 0.0
    %139 = vmatpush1.msra.mxu0 0.0
    %140 = vmatprep.subr.mxu0 0.0
    %141 = vmatpush1.msra.mxu0 0.0
    %142 = vmatprep.subr.mxu0 0.0
    %143 = vmatpush1.msra.mxu0 0.0
    %144 = vmatprep.subr.mxu0 0.0
    %145 = vmatpush1.msra.mxu0 0.0
    %146 = vmatprep.subr.mxu0 0.0
    %147 = vmatpush1.msra.mxu0 0.0
    %148 = vmatprep.subr.mxu0 0.0
    %149 = vmatpush1.msra.mxu0 0.0
    %150 = vmatprep.subr.mxu0 0.0
    %151 = vmatpush1.msra.mxu0 0.0
    %152 = vmatprep.subr.mxu0 0.0
    %153 = vmatpush1.msra.mxu0 0.0
    %154 = vmatprep.subr.mxu0 0.0
    %155 = vmatpush1.msra.mxu0 0.0
    %156 = vmatprep.subr.mxu0 0.0
    %157 = vmatpush1.msra.mxu0 0.0
    %158 = vmatprep.subr.mxu0 0.0
    %159 = vmatpush1.msra.mxu0 0.0
    %160 = vmatprep.subr.mxu0 0.0
    %161 = vmatpush1.msra.mxu0 0.0
    %162 = vmatprep.subr.mxu0 0.0
    %163 = vmatpush1.msra.mxu0 0.0
    %164 = vmatprep.subr.mxu0 0.0
    %165 = vmatpush1.msra.mxu0 0.0
    %166 = vmatprep.subr.mxu0 0.0
    %167 = vmatpush1.msra.mxu0 0.0
    %168 = vmatprep.subr.mxu0 0.0
    %169 = vmatpush1.msra.mxu0 0.0
    %170 = vmatprep.subr.mxu0 0.0
    %171 = vmatpush1.msra.mxu0 0.0
    %172 = vmatprep.subr.mxu0 0.0
    %173 = vmatpush1.msra.mxu0 0.0
    %174 = vmatprep.subr.mxu0 0.0
    %175 = vmatpush1.msra.mxu0 0.0
    %176 = vmatprep.mubr.f32.mxu0 0.0
    %177 = vmatmul.mubr.f32.gmra.mrb[0].mxu0 %v110
    %v178 = vpop.f32.mrb[0].mxu0
    %v179 = vadd.f32 %v101, %v178
    %v180 = vpop.f32.mrb[0].mxu0
    %v181 = vadd.f32 %v105, %v180
    %182 = vdwg.mxu0
    %v183 = vmax.f32 %v179, 0.0
    %v184 = vmax.f32 %v181, 0.0
    %v186 = vlaneseq
    %v187 = vshrl.u32 %v186, 7
    %v188 = vsub.s32 0, %v187
    %v189 = vrot.slane %v78, %v188
    %191 = vmatprep.subr.mxu0 0.0
    %192 = vmatpush1.msra.mxu0 %v46
    %193 = vmatprep.subr.mxu0 0.0
    %194 = vmatpush1.msra.mxu0 %v47
    %195 = vmatprep.subr.mxu0 0.0
    %196 = vmatpush1.msra.mxu0 %v48
    %197 = vmatprep.subr.mxu0 0.0
    %198 = vmatpush1.msra.mxu0 %v49
    %199 = vmatprep.subr.mxu0 0.0
    %200 = vmatpush1.msra.mxu0 %v50
    %201 = vmatprep.subr.mxu0 0.0
    %202 = vmatpush1.msra.mxu0 %v51
    %203 = vmatprep.subr.mxu0 0.0
    %204 = vmatpush1.msra.mxu0 %v52
    %205 = vmatprep.subr.mxu0 0.0
    %206 = vmatpush1.msra.mxu0 %v53
    %207 = vmatprep.subr.mxu0 0.0
    %208 = vmatpush1.msra.mxu0 %v54
    %209 = vmatprep.subr.mxu0 0.0
    %210 = vmatpush1.msra.mxu0 %v55
    %211 = vmatprep.subr.mxu0 0.0
    %212 = vmatpush1.msra.mxu0 %v56
    %213 = vmatprep.subr.mxu0 0.0
    %214 = vmatpush1.msra.mxu0 %v57
    %215 = vmatprep.subr.mxu0 0.0
    %216 = vmatpush1.msra.mxu0 %v58
    %217 = vmatprep.subr.mxu0 0.0
    %218 = vmatpush1.msra.mxu0 %v59
    %219 = vmatprep.subr.mxu0 0.0
    %220 = vmatpush1.msra.mxu0 %v60
    %221 = vmatprep.subr.mxu0 0.0
    %222 = vmatpush1.msra.mxu0 %v61
    %223 = vmatprep.subr.mxu0 0.0
    %224 = vmatpush1.msra.mxu0 %v62
    %225 = vmatprep.subr.mxu0 0.0
    %226 = vmatpush1.msra.mxu0 %v63
    %227 = vmatprep.subr.mxu0 0.0
    %228 = vmatpush1.msra.mxu0 %v64
    %229 = vmatprep.subr.mxu0 0.0
    %230 = vmatpush1.msra.mxu0 %v65
    %231 = vmatprep.subr.mxu0 0.0
    %232 = vmatpush1.msra.mxu0 %v66
    %233 = vmatprep.subr.mxu0 0.0
    %234 = vmatpush1.msra.mxu0 %v67
    %235 = vmatprep.subr.mxu0 0.0
    %236 = vmatpush1.msra.mxu0 %v68
    %237 = vmatprep.subr.mxu0 0.0
    %238 = vmatpush1.msra.mxu0 %v69
    %239 = vmatprep.subr.mxu0 0.0
    %240 = vmatpush1.msra.mxu0 %v70
    %241 = vmatprep.subr.mxu0 0.0
    %242 = vmatpush1.msra.mxu0 %v71
    %243 = vmatprep.subr.mxu0 0.0
    %244 = vmatpush1.msra.mxu0 %v72
    %245 = vmatprep.subr.mxu0 0.0
    %246 = vmatpush1.msra.mxu0 %v73
    %247 = vmatprep.subr.mxu0 0.0
    %248 = vmatpush1.msra.mxu0 %v74
    %249 = vmatprep.subr.mxu0 0.0
    %250 = vmatpush1.msra.mxu0 %v75
    %251 = vmatprep.subr.mxu0 0.0
    %252 = vmatpush1.msra.mxu0 %v76
    %253 = vmatprep.subr.mxu0 0.0
    %254 = vmatpush1.msra.mxu0 %v77
    %255 = vmatprep.mubr.f32.mxu0 %v184
    %256 = vmatmul.mubr.f32.gmra.mrb[0].mxu0 %v183
    %v257 = vpop.f32.mrb[0].mxu0
    %v258 = vadd.f32 %v189, %v257
    %v259 = vpop.f32.mrb[0].mxu0
    %260 = vdwg.mxu0
    %v261 = vmax.f32 %v258, 0.0
    %v263 = vlaneseq
    %v264 = vshrl.u32 %v263, 7
    %v265 = vsub.s32 0, %v264
    %v266 = vrot.slane %v95, %v265
    %268 = vmatprep.subr.mxu0 0.0
    %269 = vmatpush1.msra.mxu0 %v79
    %270 = vmatprep.subr.mxu0 0.0
    %271 = vmatpush1.msra.mxu0 %v80
    %272 = vmatprep.subr.mxu0 0.0
    %273 = vmatpush1.msra.mxu0 %v81
    %274 = vmatprep.subr.mxu0 0.0
    %275 = vmatpush1.msra.mxu0 %v82
    %276 = vmatprep.subr.mxu0 0.0
    %277 = vmatpush1.msra.mxu0 %v83
    %278 = vmatprep.subr.mxu0 0.0
    %279 = vmatpush1.msra.mxu0 %v84
    %280 = vmatprep.subr.mxu0 0.0
    %281 = vmatpush1.msra.mxu0 %v85
    %282 = vmatprep.subr.mxu0 0.0
    %283 = vmatpush1.msra.mxu0 %v86
    %284 = vmatprep.subr.mxu0 0.0
    %285 = vmatpush1.msra.mxu0 %v87
    %286 = vmatprep.subr.mxu0 0.0
    %287 = vmatpush1.msra.mxu0 %v88
    %288 = vmatprep.subr.mxu0 0.0
    %289 = vmatpush1.msra.mxu0 %v89
    %290 = vmatprep.subr.mxu0 0.0
    %291 = vmatpush1.msra.mxu0 %v90
    %292 = vmatprep.subr.mxu0 0.0
    %293 = vmatpush1.msra.mxu0 %v91
    %294 = vmatprep.subr.mxu0 0.0
    %295 = vmatpush1.msra.mxu0 %v92
    %296 = vmatprep.subr.mxu0 0.0
    %297 = vmatpush1.msra.mxu0 %v93
    %298 = vmatprep.subr.mxu0 0.0
    %299 = vmatpush1.msra.mxu0 %v94
    %300 = vmatprep.subr.mxu0 0.0
    %301 = vmatpush1.msra.mxu0 0.0
    %302 = vmatprep.subr.mxu0 0.0
    %303 = vmatpush1.msra.mxu0 0.0
    %304 = vmatprep.subr.mxu0 0.0
    %305 = vmatpush1.msra.mxu0 0.0
    %306 = vmatprep.subr.mxu0 0.0
    %307 = vmatpush1.msra.mxu0 0.0
    %308 = vmatprep.subr.mxu0 0.0
    %309 = vmatpush1.msra.mxu0 0.0
    %310 = vmatprep.subr.mxu0 0.0
    %311 = vmatpush1.msra.mxu0 0.0
    %312 = vmatprep.subr.mxu0 0.0
    %313 = vmatpush1.msra.mxu0 0.0
    %314 = vmatprep.subr.mxu0 0.0
    %315 = vmatpush1.msra.mxu0 0.0
    %316 = vmatprep.subr.mxu0 0.0
    %317 = vmatpush1.msra.mxu0 0.0
    %318 = vmatprep.subr.mxu0 0.0
    %319 = vmatpush1.msra.mxu0 0.0
    %320 = vmatprep.subr.mxu0 0.0
    %321 = vmatpush1.msra.mxu0 0.0
    %322 = vmatprep.subr.mxu0 0.0
    %323 = vmatpush1.msra.mxu0 0.0
    %324 = vmatprep.subr.mxu0 0.0
    %325 = vmatpush1.msra.mxu0 0.0
    %326 = vmatprep.subr.mxu0 0.0
    %327 = vmatpush1.msra.mxu0 0.0
    %328 = vmatprep.subr.mxu0 0.0
    %329 = vmatpush1.msra.mxu0 0.0
    %330 = vmatprep.subr.mxu0 0.0
    %331 = vmatpush1.msra.mxu0 0.0
    %332 = vmatprep.mubr.f32.mxu0 0.0
    %333 = vmatmul.mubr.f32.gmra.mrb[0].mxu0 %v261
    %v334 = vpop.f32.mrb[0].mxu0
    %v335 = vadd.f32 %v266, %v334
    %v336 = vpop.f32.mrb[0].mxu0
    %337 = vdwg.mxu0
    %vm338 = vcmask 64512
    %339 = vst.msk [vmem:[#allocation5] sm:$0xff] %vm338, %v335
    // Predicated region
    $region34: #{tpu_custom_call.1} parent=1 // pred_check
      _
    $region35: #{tpu_custom_call.1} parent=1 // pred_check_branch
      %341 = sbr.rel (0) target = $region37
    $region36: #{tpu_custom_call.1} parent=1 // pred_region
      %s343 = ssub.s32 128, 128
      %344 = vsyncadd [#allocation4], %s343
      %s346 = sshll.u32 [#allocation5], 4
      %s347 = int_to_ptr.vmem [resolvable:$true] %s346
      %349 = dma.vmem_to_hbm [thread:$0]  %s347, 128, %s7, [#allocation4]
    $region37: #{tpu_custom_call.1} parent=1 // pred_fallthru
      _
    // Predicated region
    $region38: #{tpu_custom_call.1} parent=1 // pred_check
      _
    $region39: #{tpu_custom_call.1} parent=1 // pred_check_branch
      %351 = sbr.rel (0) target = $region41
    $region40: #{tpu_custom_call.1} parent=1 // pred_region
      %352 = dma.done [#allocation4], 128
    $region41: #{tpu_custom_call.1} parent=1 // pred_fallthru
      _
    %353 = vsyncpa [#allocation3], 1
    %354 = vsyncpa [#allocation4], 1

</llo_original>
